<compile_context>
chip_gen: v6e
topology: v6e:2x2x1
jax: 0.10.0
libtpu: 0.0.40
codegen_flags: <defaults>
</compile_context>

<pallas_src>
import functools

import jax
import jax.numpy as jnp
from jax.experimental import pallas as pl
from jax.experimental.pallas import tpu as pltpu  # noqa: F401  (TPU backend)

BN_EPS = 1e-5


# ---------------------------------------------------------------------------
# Kernel: entire forward (all timesteps) in one invocation
# ---------------------------------------------------------------------------
def _forward_kernel(a,
                    x_ref, gamma_ref, beta_ref, w_in_ref, b_in_ref,
                    w_i2o_ref, b_i2o_ref, w_l2o_ref, b_l2o_ref, v_i_ref,
                    out_ref, v_relu_ref):
    T, B, _ = x_ref.shape               # (input_t, batch, I_pad)
    Np, Kp = w_i2o_ref.shape

    # ---- BatchNorm1d (training mode: batch stats, biased var), all t -------
    x = x_ref[...]                                       # (T, B, Ip)
    mean = jnp.mean(x, axis=1, keepdims=True)            # (T, 1, Ip)
    var = jnp.mean((x - mean) ** 2, axis=1, keepdims=True)
    xn = (x - mean) * jax.lax.rsqrt(var + BN_EPS)
    xn = xn * gamma_ref[...][:, None, :] + beta_ref[...][:, None, :]

    # ---- fc_ins[t] + ReLU, batched over t (batched MXU matmul) -------------
    h = jnp.einsum('tbi,tin->tbn', xn, w_in_ref[...],
                   preferred_element_type=jnp.float32)
    h = jnp.maximum(h + b_in_ref[...][:, None, :], 0.0)  # (T, B, Np)

    # ---- shared i2o projection for all timesteps as ONE matmul -------------
    from_in = jnp.dot(h.reshape(T * B, Np), w_i2o_ref[...],
                      preferred_element_type=jnp.float32) + b_i2o_ref[...]
    from_in = from_in.reshape(T, B, Kp)                  # (T, B, Kp)

    # ---- tiny serial recurrence (statically unrolled, T is small) ----------
    w_l2o = w_l2o_ref[...]
    b_l2o = b_l2o_ref[...]
    last = jnp.zeros((B, Kp), jnp.float32)
    for t in range(T):                                   # static unroll
        if t == 0:
            from_last = jnp.broadcast_to(b_l2o, (B, Kp))  # last == 0
        else:
            from_last = jnp.dot(last, w_l2o,
                                preferred_element_type=jnp.float32) + b_l2o
        act = jnp.maximum(from_in[t] + from_last, 0.0)
        if a == 1.0:                 # compile-time specialization of (1-a) term
            last = act
        else:
            last = a * act + (1.0 - a) * from_last
        out_ref[t] = last            # (B, Kp): lane-dense, unmasked store

    # ---- fused relu(v_i) ----------------------------------------------------
    v_relu_ref[...] = jnp.maximum(v_i_ref[...], 0.0)


# ---------------------------------------------------------------------------
# Wrapper
# ---------------------------------------------------------------------------
def _round_up(x, m):
    return ((x + m - 1) // m) * m


def dynamic_model_nz_forward(params, x_i, z_u, z_v, input_t, a=1.0):
    """Pallas implementation of DynamicModelNZ.forward.

    Returns (outputs, v_i_relu) where `outputs` has shape (input_t, B, K),
    i.e. the stack of the module's output_list (outputs[t] == output_list[t]).
    z_u and z_v are accepted but unused, exactly as in the PyTorch forward.
    """
    del z_u, z_v  # unused in the reference forward pass
    B, T, I = x_i.shape
    nodes = params["w_in"].shape[2]
    K = params["w_i2o"].shape[1]
    assert 0 < input_t <= T
    # NOTE: the batch axis is NOT padded (BatchNorm statistics depend on B).

    Ip = _round_up(I, 128)
    Np = _round_up(nodes, 128)
    Kp = _round_up(K, 128)
    f32 = jnp.float32

    # Time-major activations, lane-padded once.
    x = jnp.transpose(x_i[:, :input_t].astype(f32), (1, 0, 2))   # (t, B, I)
    x = jnp.pad(x, ((0, 0), (0, 0), (0, Ip - I)))

    gamma = jnp.pad(params["bn_gamma"][:input_t].astype(f32),
                    ((0, 0), (0, Ip - I)), constant_values=1.0)
    beta = jnp.pad(params["bn_beta"][:input_t].astype(f32),
                   ((0, 0), (0, Ip - I)))
    w_in = jnp.pad(params["w_in"][:input_t].astype(f32),
                   ((0, 0), (0, Ip - I), (0, Np - nodes)))
    b_in = jnp.pad(params["b_in"][:input_t].astype(f32),
                   ((0, 0), (0, Np - nodes)))
    w_i2o = jnp.pad(params["w_i2o"].astype(f32),
                    ((0, Np - nodes), (0, Kp - K)))
    b_i2o = jnp.pad(params["b_i2o"].astype(f32), ((0, 0), (0, Kp - K)))
    w_l2o = jnp.pad(params["w_l2o"].astype(f32),
                    ((0, Kp - K), (0, Kp - K)))
    b_l2o = jnp.pad(params["b_l2o"].astype(f32), ((0, 0), (0, Kp - K)))

    out, v_relu = pl.pallas_call(
        functools.partial(_forward_kernel, float(a)),
        out_shape=(jax.ShapeDtypeStruct((input_t, B, Kp), f32),
                   jax.ShapeDtypeStruct(params["v_i"].shape, f32)),
    )(x, gamma, beta, w_in, b_in, w_i2o, b_i2o, w_l2o, b_l2o,
      params["v_i"].astype(f32))

    return out[:, :, :K], v_relu


# ---------------------------------------------------------------------------
# Deterministic parameter construction (shapes follow DynamicModelNZ.__init__)
# ---------------------------------------------------------------------------
def _kaiming_uniform(key, shape, fan_in):
    bound = (6.0 / fan_in) ** 0.5          # nn.init.kaiming_uniform_ default
    return jax.random.uniform(key, shape, jnp.float32, -bound, bound)


def init_params(key, T, I, K, nodes):
    keys = jax.random.split(key, 8)
    inv_i, inv_n, inv_k = (1.0 / I) ** 0.5, (1.0 / nodes) ** 0.5, (1.0 / K) ** 0.5
    return {
        "v_i":      _kaiming_uniform(keys[0], (K, I), I),
        # fc_ins[t]: Linear(I, nodes), weight stored transposed (I, nodes)
        "w_in":     _kaiming_uniform(keys[1], (T, I, nodes), I),
        "b_in":     jax.random.uniform(keys[2], (T, nodes), jnp.float32,
                                       -inv_i, inv_i),
        # i2o: Linear(nodes, K), stored transposed (nodes, K)
        "w_i2o":    _kaiming_uniform(keys[3], (nodes, K), nodes),
        "b_i2o":    jax.random.uniform(keys[4], (1, K), jnp.float32,
                                       -inv_n, inv_n),
        # l2o: Linear(K, K), stored transposed (K, K)
        "w_l2o":    _kaiming_uniform(keys[5], (K, K), K),
        "b_l2o":    jax.random.uniform(keys[6], (1, K), jnp.float32,
                                       -inv_k, inv_k),
        # BatchNorm1d(I) per timestep, default affine init
        "bn_gamma": jnp.ones((T, I), jnp.float32),
        "bn_beta":  jnp.zeros((T, I), jnp.float32),
    }
    # TODO(synk): `register_buffer('last', ...)` and the unused z_u/z_v paths
    # of the PyTorch module have no effect on forward() and are not modeled.


# ---------------------------------------------------------------------------
# Pure-JAX reference for verification (mirrors the PyTorch forward)
# ---------------------------------------------------------------------------
def reference_forward(x_i, input_t, params, a=1.0):
    B = x_i.shape[0]
    K = params["w_i2o"].shape[1]
    last = jnp.zeros((B, K), jnp.float32)
    outs = []
    for t in range(input_t):
        x_ = x_i[:, t].astype(jnp.float32)
        mean = jnp.mean(x_, axis=0, keepdims=True)
        var = jnp.mean((x_ - mean) ** 2, axis=0, keepdims=True)
        x_ = (x_ - mean) / jnp.sqrt(var + BN_EPS)
        x_ = x_ * params["bn_gamma"][t] + params["bn_beta"][t]
        h = jnp.maximum(x_ @ params["w_in"][t] + params["b_in"][t], 0.0)
        from_in = h @ params["w_i2o"] + params["b_i2o"]
        from_last = last @ params["w_l2o"] + params["b_l2o"]
        last = a * jnp.maximum(from_in + from_last, 0.0) + (1.0 - a) * from_last
        outs.append(last)
    return jnp.stack(outs), jnp.maximum(params["v_i"], 0.0)


# ---------------------------------------------------------------------------
if __name__ == "__main__":
    # Small shapes consistent with the module signature
    B, T, I, K, nodes = 8, 4, 6, 10, 64
    H_u = H_v = 5

    root = jax.random.PRNGKey(0)
    k_p, k_x, k_u, k_v = jax.random.split(root, 4)

    params = init_params(k_p, T, I, K, nodes)
    x_i = jax.random.normal(k_x, (B, T, I), jnp.float32)
    z_u = jax.random.normal(k_u, (B, H_u), jnp.float32)   # unused in forward
    z_v = jax.random.normal(k_v, (B, H_v), jnp.float32)   # unused in forward

    for a, input_t in ((1.0, T), (0.5, T), (1.0, T - 1)):
        out, v_relu = dynamic_model_nz_forward(params, x_i, z_u, z_v,
                                               input_t, a=a)
        jax.block_until_ready(out)
        jax.block_until_ready(v_relu)

        ref_out, ref_v = reference_forward(x_i, input_t, params, a=a)
        assert out.shape == (input_t, B, K)
        assert jnp.allclose(out, ref_out, atol=1e-4, rtol=1e-4), \
            f"output mismatch (a={a}, input_t={input_t})"
        assert jnp.allclose(v_relu, ref_v, atol=1e-6), "v_i relu mismatch"

    print("KERNEL_OK")
</pallas_src>

<mosaic_0001>
module attributes {stable_mosaic.version = 11 : i64} {
  func.func @_forward_kernel(%arg0: memref<4x8x128xf32, #tpu.memory_space<vmem>>, %arg1: memref<4x128xf32, #tpu.memory_space<vmem>>, %arg2: memref<4x128xf32, #tpu.memory_space<vmem>>, %arg3: memref<4x128x128xf32, #tpu.memory_space<vmem>>, %arg4: memref<4x128xf32, #tpu.memory_space<vmem>>, %arg5: memref<128x128xf32, #tpu.memory_space<vmem>>, %arg6: memref<1x128xf32, #tpu.memory_space<vmem>>, %arg7: memref<128x128xf32, #tpu.memory_space<vmem>>, %arg8: memref<1x128xf32, #tpu.memory_space<vmem>>, %arg9: memref<10x6xf32, #tpu.memory_space<vmem>>, %arg10: memref<4x8x128xf32, #tpu.memory_space<vmem>>, %arg11: memref<10x6xf32, #tpu.memory_space<vmem>>) attributes {dimension_semantics = [], scalar_prefetch = 0 : i64, scratch_operands = 0 : i64, tpu.core_type = #tpu.core_type<tc>} {
    %c0 = arith.constant 0 : index
    %c0_0 = arith.constant 0 : index
    %c0_1 = arith.constant 0 : index
    %0 = vector.load %arg0[%c0, %c0_0, %c0_1] : memref<4x8x128xf32, #tpu.memory_space<vmem>>, vector<4x8x128xf32>
    %cst = arith.constant dense<0.000000e+00> : vector<4x128xf32>
    %1 = vector.multi_reduction <add>, %0, %cst [1] : vector<4x8x128xf32> to vector<4x128xf32>
    %2 = vector.shape_cast %1 : vector<4x128xf32> to vector<4x1x128xf32>
    %cst_2 = arith.constant 8.000000e+00 : f32
    %3 = vector.broadcast %cst_2 : f32 to vector<4x1x128xf32>
    %4 = arith.divf %2, %3 : vector<4x1x128xf32>
    %5 = vector.broadcast %4 : vector<4x1x128xf32> to vector<4x8x128xf32>
    %6 = arith.subf %0, %5 : vector<4x8x128xf32>
    %7 = arith.mulf %6, %6 : vector<4x8x128xf32>
    %cst_3 = arith.constant dense<0.000000e+00> : vector<4x128xf32>
    %8 = vector.multi_reduction <add>, %7, %cst_3 [1] : vector<4x8x128xf32> to vector<4x128xf32>
    %9 = vector.shape_cast %8 : vector<4x128xf32> to vector<4x1x128xf32>
    %cst_4 = arith.constant 8.000000e+00 : f32
    %10 = vector.broadcast %cst_4 : f32 to vector<4x1x128xf32>
    %11 = arith.divf %9, %10 : vector<4x1x128xf32>
    %12 = vector.broadcast %4 : vector<4x1x128xf32> to vector<4x8x128xf32>
    %13 = arith.subf %0, %12 : vector<4x8x128xf32>
    %cst_5 = arith.constant 9.99999974E-6 : f32
    %14 = vector.broadcast %cst_5 : f32 to vector<4x1x128xf32>
    %15 = arith.addf %11, %14 : vector<4x1x128xf32>
    %16 = math.rsqrt %15 : vector<4x1x128xf32>
    %17 = vector.broadcast %16 : vector<4x1x128xf32> to vector<4x8x128xf32>
    %18 = arith.mulf %13, %17 : vector<4x8x128xf32>
    %c0_6 = arith.constant 0 : index
    %c0_7 = arith.constant 0 : index
    %19 = vector.load %arg1[%c0_6, %c0_7] : memref<4x128xf32, #tpu.memory_space<vmem>>, vector<4x128xf32>
    %20 = vector.shape_cast %19 : vector<4x128xf32> to vector<4x1x128xf32>
    %21 = vector.broadcast %20 : vector<4x1x128xf32> to vector<4x8x128xf32>
    %22 = arith.mulf %18, %21 : vector<4x8x128xf32>
    %c0_8 = arith.constant 0 : index
    %c0_9 = arith.constant 0 : index
    %23 = vector.load %arg2[%c0_8, %c0_9] : memref<4x128xf32, #tpu.memory_space<vmem>>, vector<4x128xf32>
    %24 = vector.shape_cast %23 : vector<4x128xf32> to vector<4x1x128xf32>
    %25 = vector.broadcast %24 : vector<4x1x128xf32> to vector<4x8x128xf32>
    %26 = arith.addf %22, %25 : vector<4x8x128xf32>
    %c0_10 = arith.constant 0 : index
    %c0_11 = arith.constant 0 : index
    %c0_12 = arith.constant 0 : index
    %27 = vector.load %arg3[%c0_10, %c0_11, %c0_12] : memref<4x128x128xf32, #tpu.memory_space<vmem>>, vector<4x128x128xf32>
    "tpu.trace_start"() <{level = 10 : i32, message = "tbi,tin->tbn"}> : () -> ()
    %cst_13 = arith.constant dense<0.000000e+00> : vector<4x8x128xf32>
    %28 = tpu.matmul %26, %27, %cst_13 {dimension_numbers = #tpu.dot_dimension_numbers<[2], [1], [1], [2], [0, 0, 0, 1, 1, 2], [0], [0]>} : vector<4x8x128xf32>, vector<4x128x128xf32>, vector<4x8x128xf32> -> vector<4x8x128xf32>
    "tpu.trace_stop"() : () -> ()
    %c0_14 = arith.constant 0 : index
    %c0_15 = arith.constant 0 : index
    %29 = vector.load %arg4[%c0_14, %c0_15] : memref<4x128xf32, #tpu.memory_space<vmem>>, vector<4x128xf32>
    %30 = vector.shape_cast %29 : vector<4x128xf32> to vector<4x1x128xf32>
    %31 = vector.broadcast %30 : vector<4x1x128xf32> to vector<4x8x128xf32>
    %32 = arith.addf %28, %31 : vector<4x8x128xf32>
    %cst_16 = arith.constant 0.000000e+00 : f32
    %33 = vector.broadcast %cst_16 : f32 to vector<4x8x128xf32>
    %34 = arith.maximumf %32, %33 : vector<4x8x128xf32>
    %35 = vector.shape_cast %34 : vector<4x8x128xf32> to vector<32x128xf32>
    %c0_17 = arith.constant 0 : index
    %c0_18 = arith.constant 0 : index
    %36 = vector.load %arg5[%c0_17, %c0_18] : memref<128x128xf32, #tpu.memory_space<vmem>>, vector<128x128xf32>
    %cst_19 = arith.constant dense<0.000000e+00> : vector<32x128xf32>
    %37 = tpu.matmul %35, %36, %cst_19 {dimension_numbers = #tpu.dot_dimension_numbers<[1], [0], [0], [1], [0, 0, 1, 1], [], []>} : vector<32x128xf32>, vector<128x128xf32>, vector<32x128xf32> -> vector<32x128xf32>
    %c0_20 = arith.constant 0 : index
    %c0_21 = arith.constant 0 : index
    %38 = vector.load %arg6[%c0_20, %c0_21] : memref<1x128xf32, #tpu.memory_space<vmem>>, vector<1x128xf32>
    %39 = vector.broadcast %38 : vector<1x128xf32> to vector<32x128xf32>
    %40 = arith.addf %37, %39 : vector<32x128xf32>
    %41 = vector.shape_cast %40 : vector<32x128xf32> to vector<4x8x128xf32>
    %c0_22 = arith.constant 0 : index
    %c0_23 = arith.constant 0 : index
    %42 = vector.load %arg7[%c0_22, %c0_23] : memref<128x128xf32, #tpu.memory_space<vmem>>, vector<128x128xf32>
    %c0_24 = arith.constant 0 : index
    %c0_25 = arith.constant 0 : index
    %43 = vector.load %arg8[%c0_24, %c0_25] : memref<1x128xf32, #tpu.memory_space<vmem>>, vector<1x128xf32>
    %44 = vector.shape_cast %43 : vector<1x128xf32> to vector<1x128xf32>
    %45 = vector.broadcast %44 : vector<1x128xf32> to vector<8x128xf32>
    %46 = vector.extract_strided_slice %41 {offsets = [0, 0, 0], sizes = [1, 8, 128], strides = [1, 1, 1]} : vector<4x8x128xf32> to vector<1x8x128xf32>
    %47 = vector.shape_cast %46 : vector<1x8x128xf32> to vector<8x128xf32>
    %48 = arith.addf %47, %45 : vector<8x128xf32>
    %cst_26 = arith.constant 0.000000e+00 : f32
    %49 = vector.broadcast %cst_26 : f32 to vector<8x128xf32>
    %50 = arith.maximumf %48, %49 : vector<8x128xf32>
    %c0_27 = arith.constant 0 : index
    %c0_28 = arith.constant 0 : index
    %c0_29 = arith.constant 0 : index
    %51 = vector.load %arg10[%c0_27, %c0_28, %c0_29] : memref<4x8x128xf32, #tpu.memory_space<vmem>>, vector<1x8x128xf32>
    %52 = vector.shape_cast %51 : vector<1x8x128xf32> to vector<8x128xf32>
    %53 = vector.shape_cast %50 : vector<8x128xf32> to vector<1x8x128xf32>
    tpu.vector_store %arg10[%c0_27, %c0_28, %c0_29], %53 {strides = array<i32>} : memref<4x8x128xf32, #tpu.memory_space<vmem>>, vector<1x8x128xf32>,
    %cst_30 = arith.constant dense<0.000000e+00> : vector<8x128xf32>
    %54 = tpu.matmul %50, %42, %cst_30 {dimension_numbers = #tpu.dot_dimension_numbers<[1], [0], [0], [1], [0, 0, 1, 1], [], []>} : vector<8x128xf32>, vector<128x128xf32>, vector<8x128xf32> -> vector<8x128xf32>
    %55 = vector.broadcast %43 : vector<1x128xf32> to vector<8x128xf32>
    %56 = arith.addf %54, %55 : vector<8x128xf32>
    %57 = vector.extract_strided_slice %41 {offsets = [1, 0, 0], sizes = [1, 8, 128], strides = [1, 1, 1]} : vector<4x8x128xf32> to vector<1x8x128xf32>
    %58 = vector.shape_cast %57 : vector<1x8x128xf32> to vector<8x128xf32>
    %59 = arith.addf %58, %56 : vector<8x128xf32>
    %cst_31 = arith.constant 0.000000e+00 : f32
    %60 = vector.broadcast %cst_31 : f32 to vector<8x128xf32>
    %61 = arith.maximumf %59, %60 : vector<8x128xf32>
    %c1 = arith.constant 1 : index
    %c0_32 = arith.constant 0 : index
    %c0_33 = arith.constant 0 : index
    %62 = vector.load %arg10[%c1, %c0_32, %c0_33] : memref<4x8x128xf32, #tpu.memory_space<vmem>>, vector<1x8x128xf32>
    %63 = vector.shape_cast %62 : vector<1x8x128xf32> to vector<8x128xf32>
    %64 = vector.shape_cast %61 : vector<8x128xf32> to vector<1x8x128xf32>
    tpu.vector_store %arg10[%c1, %c0_32, %c0_33], %64 {strides = array<i32>} : memref<4x8x128xf32, #tpu.memory_space<vmem>>, vector<1x8x128xf32>,
    %cst_34 = arith.constant dense<0.000000e+00> : vector<8x128xf32>
    %65 = tpu.matmul %61, %42, %cst_34 {dimension_numbers = #tpu.dot_dimension_numbers<[1], [0], [0], [1], [0, 0, 1, 1], [], []>} : vector<8x128xf32>, vector<128x128xf32>, vector<8x128xf32> -> vector<8x128xf32>
    %66 = vector.broadcast %43 : vector<1x128xf32> to vector<8x128xf32>
    %67 = arith.addf %65, %66 : vector<8x128xf32>
    %68 = vector.extract_strided_slice %41 {offsets = [2, 0, 0], sizes = [1, 8, 128], strides = [1, 1, 1]} : vector<4x8x128xf32> to vector<1x8x128xf32>
    %69 = vector.shape_cast %68 : vector<1x8x128xf32> to vector<8x128xf32>
    %70 = arith.addf %69, %67 : vector<8x128xf32>
    %cst_35 = arith.constant 0.000000e+00 : f32
    %71 = vector.broadcast %cst_35 : f32 to vector<8x128xf32>
    %72 = arith.maximumf %70, %71 : vector<8x128xf32>
    %c2 = arith.constant 2 : index
    %c0_36 = arith.constant 0 : index
    %c0_37 = arith.constant 0 : index
    %73 = vector.load %arg10[%c2, %c0_36, %c0_37] : memref<4x8x128xf32, #tpu.memory_space<vmem>>, vector<1x8x128xf32>
    %74 = vector.shape_cast %73 : vector<1x8x128xf32> to vector<8x128xf32>
    %75 = vector.shape_cast %72 : vector<8x128xf32> to vector<1x8x128xf32>
    tpu.vector_store %arg10[%c2, %c0_36, %c0_37], %75 {strides = array<i32>} : memref<4x8x128xf32, #tpu.memory_space<vmem>>, vector<1x8x128xf32>,
    %cst_38 = arith.constant dense<0.000000e+00> : vector<8x128xf32>
    %76 = tpu.matmul %72, %42, %cst_38 {dimension_numbers = #tpu.dot_dimension_numbers<[1], [0], [0], [1], [0, 0, 1, 1], [], []>} : vector<8x128xf32>, vector<128x128xf32>, vector<8x128xf32> -> vector<8x128xf32>
    %77 = vector.broadcast %43 : vector<1x128xf32> to vector<8x128xf32>
    %78 = arith.addf %76, %77 : vector<8x128xf32>
    %79 = vector.extract_strided_slice %41 {offsets = [3, 0, 0], sizes = [1, 8, 128], strides = [1, 1, 1]} : vector<4x8x128xf32> to vector<1x8x128xf32>
    %80 = vector.shape_cast %79 : vector<1x8x128xf32> to vector<8x128xf32>
    %81 = arith.addf %80, %78 : vector<8x128xf32>
    %cst_39 = arith.constant 0.000000e+00 : f32
    %82 = vector.broadcast %cst_39 : f32 to vector<8x128xf32>
    %83 = arith.maximumf %81, %82 : vector<8x128xf32>
    %c3 = arith.constant 3 : index
    %c0_40 = arith.constant 0 : index
    %c0_41 = arith.constant 0 : index
    %84 = vector.load %arg10[%c3, %c0_40, %c0_41] : memref<4x8x128xf32, #tpu.memory_space<vmem>>, vector<1x8x128xf32>
    %85 = vector.shape_cast %84 : vector<1x8x128xf32> to vector<8x128xf32>
    %86 = vector.shape_cast %83 : vector<8x128xf32> to vector<1x8x128xf32>
    tpu.vector_store %arg10[%c3, %c0_40, %c0_41], %86 {strides = array<i32>} : memref<4x8x128xf32, #tpu.memory_space<vmem>>, vector<1x8x128xf32>,
    %c0_42 = arith.constant 0 : index
    %c0_43 = arith.constant 0 : index
    %87 = vector.load %arg9[%c0_42, %c0_43] : memref<10x6xf32, #tpu.memory_space<vmem>>, vector<10x6xf32>
    %cst_44 = arith.constant 0.000000e+00 : f32
    %88 = vector.broadcast %cst_44 : f32 to vector<10x6xf32>
    %89 = arith.maximumf %87, %88 : vector<10x6xf32>
    %c0_45 = arith.constant 0 : index
    %c0_46 = arith.constant 0 : index
    %90 = vector.load %arg11[%c0_45, %c0_46] : memref<10x6xf32, #tpu.memory_space<vmem>>, vector<10x6xf32>
    tpu.vector_store %arg11[%c0_45, %c0_46], %89 {strides = array<i32>} : memref<10x6xf32, #tpu.memory_space<vmem>>, vector<10x6xf32>,
    return
  }
}

</mosaic_0001>

<llo_original>
// kernel: tpu_custom_call.1
$region0: #{tpu_custom_call.1}
  #allocation0 [shape = 'u32[]', space=smem, size = 0x4, offset = 0x4, fixed_abs, tag = 'smem constant byte address 0x4 - core index']
  #allocation1 [shape = 'u32[144,128]{1,0:T(1,128)}', space=vmem, size = 0x12000, scoped, tag = 'internal scratch']
  %s0 = inlined_call_operand.hbm [shape: f32[4,8,128], index: 0, kind: input, shape index: {}]
  %s1 = inlined_call_operand.vmem [shape: f32[4,128], index: 1, kind: input, shape index: {}]
  %s2 = inlined_call_operand.vmem [shape: f32[4,128], index: 2, kind: input, shape index: {}]
  %s3 = inlined_call_operand.hbm [shape: f32[4,128,128], index: 3, kind: input, shape index: {}]
  %s4 = inlined_call_operand.vmem [shape: f32[4,128], index: 4, kind: input, shape index: {}]
  %s5 = inlined_call_operand.hbm [shape: f32[128,128], index: 5, kind: input, shape index: {}]
  %s6 = inlined_call_operand.vmem [shape: f32[1,128], index: 6, kind: input, shape index: {}]
  %s7 = inlined_call_operand.hbm [shape: f32[128,128], index: 7, kind: input, shape index: {}]
  %s8 = inlined_call_operand.vmem [shape: f32[1,128], index: 8, kind: input, shape index: {}]
  %s9 = inlined_call_operand.vmem [shape: f32[10,6], index: 9, kind: input, shape index: {}]
  %s10 = inlined_call_operand.hbm [shape: f32[4,8,128], index: 10, kind: output, shape index: {0}]
  %s11 = inlined_call_operand.vmem [shape: f32[10,6], index: 11, kind: output, shape index: {1}]
  %12 = xla_tuple %s10, %s11
  %s13 = sld [smem:[#allocation0]]
  $region74: #{tpu_custom_call.1} parent=0
    _
  %s15 = ssub.s32 1, %s13
  %s16 = scalar_select 0, %s15, %s13
  $region1: #{tpu_custom_call.1} parent=0
    #allocation2 [shape = 'u8[16384]{0}', space=vmem, size = 0x4000, scoped, tag = 'input window, operand 0, single buffered']
    #allocation3 [shape = 's32[1]{0}', space=sflag, size = 0x4, scoped, tag = 'scoped memory for tpu_custom_call.1']
    #allocation4 [shape = 's32[1]{0}', space=sflag, size = 0x4, scoped, tag = 'scoped memory for tpu_custom_call.1']
    #allocation5 [shape = 'u8[262144]{0}', space=vmem, size = 0x40000, scoped, tag = 'input window, operand 3, single buffered']
    #allocation6 [shape = 's32[1]{0}', space=sflag, size = 0x4, scoped, tag = 'scoped memory for tpu_custom_call.1']
    #allocation7 [shape = 'u8[65536]{0}', space=vmem, size = 0x10000, scoped, tag = 'input window, operand 5, single buffered']
    #allocation8 [shape = 'u8[65536]{0}', space=vmem, size = 0x10000, scoped, tag = 'input window, operand 7, single buffered']
    #allocation9 [shape = 's32[1]{0}', space=sflag, size = 0x4, scoped, tag = 'scoped memory for tpu_custom_call.1']
    #allocation10 [shape = 'u8[16384]{0}', space=vmem, size = 0x4000, scoped, tag = 'output window, operand 0, single buffered']
    %17 = vsyncpa [#allocation3], 0
    %18 = vsyncpa [#allocation6], 0
    %19 = vsyncpa [#allocation9], 0
    %20 = vsyncpa [#allocation4], 0
    // Predicated region
    $region2: #{tpu_custom_call.1} parent=1 // pred_check
      _
    $region3: #{tpu_custom_call.1} parent=1 // pred_check_branch
      %22 = sbr.rel (0) target = $region5
    $region4: #{tpu_custom_call.1} parent=1 // pred_region
      %s24 = ssub.s32 512, 512
      %25 = vsyncadd [#allocation3], %s24
      %s26 = sshll.u32 [#allocation2], 4
      %s27 = int_to_ptr.vmem [resolvable:$true] %s26
      %32 = dma.hbm_to_vmem [thread:$0]  %s0, 512, %s27, [#allocation3], 128, 128, 8
    $region5: #{tpu_custom_call.1} parent=1 // pred_fallthru
      _
    // Predicated region
    $region6: #{tpu_custom_call.1} parent=1 // pred_check
      _
    $region7: #{tpu_custom_call.1} parent=1 // pred_check_branch
      %34 = sbr.rel (0) target = $region9
    $region8: #{tpu_custom_call.1} parent=1 // pred_region
      _
    $region9: #{tpu_custom_call.1} parent=1 // pred_fallthru
      _
    // Predicated region
    $region10: #{tpu_custom_call.1} parent=1 // pred_check
      _
    $region11: #{tpu_custom_call.1} parent=1 // pred_check_branch
      %36 = sbr.rel (0) target = $region13
    $region12: #{tpu_custom_call.1} parent=1 // pred_region
      _
    $region13: #{tpu_custom_call.1} parent=1 // pred_fallthru
      _
    // Predicated region
    $region14: #{tpu_custom_call.1} parent=1 // pred_check
      _
    $region15: #{tpu_custom_call.1} parent=1 // pred_check_branch
      %38 = sbr.rel (0) target = $region17
    $region16: #{tpu_custom_call.1} parent=1 // pred_region
      %s40 = ssub.s32 8192, 8192
      %41 = vsyncadd [#allocation6], %s40
      %s42 = sshll.u32 [#allocation5], 4
      %s43 = int_to_ptr.vmem [resolvable:$true] %s42
      %48 = dma.hbm_to_vmem [thread:$0]  %s3, 8192, %s43, [#allocation6], 128, 128, 8
    $region17: #{tpu_custom_call.1} parent=1 // pred_fallthru
      _
    // Predicated region
    $region18: #{tpu_custom_call.1} parent=1 // pred_check
      _
    $region19: #{tpu_custom_call.1} parent=1 // pred_check_branch
      %50 = sbr.rel (0) target = $region21
    $region20: #{tpu_custom_call.1} parent=1 // pred_region
      _
    $region21: #{tpu_custom_call.1} parent=1 // pred_fallthru
      _
    // Predicated region
    $region22: #{tpu_custom_call.1} parent=1 // pred_check
      _
    $region23: #{tpu_custom_call.1} parent=1 // pred_check_branch
      %52 = sbr.rel (0) target = $region25
    $region24: #{tpu_custom_call.1} parent=1 // pred_region
      %s54 = ssub.s32 2048, 2048
      %55 = vsyncadd [#allocation6], %s54
      %s56 = sshll.u32 [#allocation7], 4
      %s57 = int_to_ptr.vmem [resolvable:$true] %s56
      %62 = dma.hbm_to_vmem [thread:$0]  %s5, 2048, %s57, [#allocation6], 128, 128, 8
    $region25: #{tpu_custom_call.1} parent=1 // pred_fallthru
      _
    // Predicated region
    $region26: #{tpu_custom_call.1} parent=1 // pred_check
      _
    $region27: #{tpu_custom_call.1} parent=1 // pred_check_branch
      %64 = sbr.rel (0) target = $region29
    $region28: #{tpu_custom_call.1} parent=1 // pred_region
      _
    $region29: #{tpu_custom_call.1} parent=1 // pred_fallthru
      _
    // Predicated region
    $region30: #{tpu_custom_call.1} parent=1 // pred_check
      _
    $region31: #{tpu_custom_call.1} parent=1 // pred_check_branch
      %66 = sbr.rel (0) target = $region33
    $region32: #{tpu_custom_call.1} parent=1 // pred_region
      %s68 = ssub.s32 2048, 2048
      %69 = vsyncadd [#allocation9], %s68
      %s70 = sshll.u32 [#allocation8], 4
      %s71 = int_to_ptr.vmem [resolvable:$true] %s70
      %76 = dma.hbm_to_vmem [thread:$0]  %s7, 2048, %s71, [#allocation9], 128, 128, 8
    $region33: #{tpu_custom_call.1} parent=1 // pred_fallthru
      _
    // Predicated region
    $region34: #{tpu_custom_call.1} parent=1 // pred_check
      _
    $region35: #{tpu_custom_call.1} parent=1 // pred_check_branch
      %78 = sbr.rel (0) target = $region37
    $region36: #{tpu_custom_call.1} parent=1 // pred_region
      _
    $region37: #{tpu_custom_call.1} parent=1 // pred_fallthru
      _
    // Predicated region
    $region38: #{tpu_custom_call.1} parent=1 // pred_check
      _
    $region39: #{tpu_custom_call.1} parent=1 // pred_check_branch
      %80 = sbr.rel (0) target = $region41
    $region40: #{tpu_custom_call.1} parent=1 // pred_region
      _
    $region41: #{tpu_custom_call.1} parent=1 // pred_fallthru
      _
    // Predicated region
    $region42: #{tpu_custom_call.1} parent=1 // pred_check
      _
    $region43: #{tpu_custom_call.1} parent=1 // pred_check_branch
      %82 = sbr.rel (0) target = $region45
    $region44: #{tpu_custom_call.1} parent=1 // pred_region
      %83 = dma.done [#allocation3], 512
    $region45: #{tpu_custom_call.1} parent=1 // pred_fallthru
      _
    // Predicated region
    $region46: #{tpu_custom_call.1} parent=1 // pred_check
      _
    $region47: #{tpu_custom_call.1} parent=1 // pred_check_branch
      %85 = sbr.rel (0) target = $region49
    $region48: #{tpu_custom_call.1} parent=1 // pred_region
      %86 = dma.done [#allocation6], 8192
    $region49: #{tpu_custom_call.1} parent=1 // pred_fallthru
      _
    // Predicated region
    $region50: #{tpu_custom_call.1} parent=1 // pred_check
      _
    $region51: #{tpu_custom_call.1} parent=1 // pred_check_branch
      %88 = sbr.rel (0) target = $region53
    $region52: #{tpu_custom_call.1} parent=1 // pred_region
      %89 = dma.done [#allocation6], 2048
    $region53: #{tpu_custom_call.1} parent=1 // pred_fallthru
      _
    // Predicated region
    $region54: #{tpu_custom_call.1} parent=1 // pred_check
      _
    $region55: #{tpu_custom_call.1} parent=1 // pred_check_branch
      %91 = sbr.rel (0) target = $region57
    $region56: #{tpu_custom_call.1} parent=1 // pred_region
      %92 = dma.done [#allocation9], 2048
    $region57: #{tpu_custom_call.1} parent=1 // pred_fallthru
      _
    %v93 = vld [vmem:[#allocation2] sm:$0xff]
    %v94 = vld [vmem:[#allocation2 + $0x8] sm:$0xff]
    %v95 = vld [vmem:[#allocation2 + $0x10] sm:$0xff]
    %v96 = vld [vmem:[#allocation2 + $0x18] sm:$0xff]
    %v97 = vrot.slane %v93, 4
    %v98 = vadd.f32 %v93, %v97
    %v99 = vrot.slane %v98, 2
    %v100 = vadd.f32 %v98, %v99
    %v101 = vrot.slane %v100, 1
    %v102 = vadd.f32 %v100, %v101
    %v103 = vrot.slane %v94, 4
    %v104 = vadd.f32 %v94, %v103
    %v105 = vrot.slane %v104, 2
    %v106 = vadd.f32 %v104, %v105
    %v107 = vrot.slane %v106, 1
    %v108 = vadd.f32 %v106, %v107
    %v109 = vrot.slane %v95, 4
    %v110 = vadd.f32 %v95, %v109
    %v111 = vrot.slane %v110, 2
    %v112 = vadd.f32 %v110, %v111
    %v113 = vrot.slane %v112, 1
    %v114 = vadd.f32 %v112, %v113
    %v115 = vrot.slane %v96, 4
    %v116 = vadd.f32 %v96, %v115
    %v117 = vrot.slane %v116, 2
    %v118 = vadd.f32 %v116, %v117
    %v119 = vrot.slane %v118, 1
    %v120 = vadd.f32 %v118, %v119
    %v121 = vrcp.pop 8.0
    %v122 = vmul.f32 %v102, %v121
    %v123 = vmul.f32 %v108, %v121
    %v124 = vmul.f32 %v114, %v121
    %v125 = vmul.f32 %v120, %v121
    %v126 = vsub.f32 %v93, %v122
    %v127 = vsub.f32 %v94, %v123
    %v128 = vsub.f32 %v95, %v124
    %v129 = vsub.f32 %v96, %v125
    %v130 = vmul.f32 %v126, %v126
    %v131 = vmul.f32 %v127, %v127
    %v132 = vmul.f32 %v128, %v128
    %v133 = vmul.f32 %v129, %v129
    %v134 = vrot.slane %v130, 4
    %v135 = vadd.f32 %v130, %v134
    %v136 = vrot.slane %v135, 2
    %v137 = vadd.f32 %v135, %v136
    %v138 = vrot.slane %v137, 1
    %v139 = vadd.f32 %v137, %v138
    %v140 = vrot.slane %v131, 4
    %v141 = vadd.f32 %v131, %v140
    %v142 = vrot.slane %v141, 2
    %v143 = vadd.f32 %v141, %v142
    %v144 = vrot.slane %v143, 1
    %v145 = vadd.f32 %v143, %v144
    %v146 = vrot.slane %v132, 4
    %v147 = vadd.f32 %v132, %v146
    %v148 = vrot.slane %v147, 2
    %v149 = vadd.f32 %v147, %v148
    %v150 = vrot.slane %v149, 1
    %v151 = vadd.f32 %v149, %v150
    %v152 = vrot.slane %v133, 4
    %v153 = vadd.f32 %v133, %v152
    %v154 = vrot.slane %v153, 2
    %v155 = vadd.f32 %v153, %v154
    %v156 = vrot.slane %v155, 1
    %v157 = vadd.f32 %v155, %v156
    %v158 = vmul.f32 %v139, %v121
    %v159 = vmul.f32 %v145, %v121
    %v160 = vmul.f32 %v151, %v121
    %v161 = vmul.f32 %v157, %v121
    %v162 = vadd.f32 %v158, 1e-05
    %v163 = vadd.f32 %v159, 1e-05
    %v164 = vadd.f32 %v160, 1e-05
    %v165 = vadd.f32 %v161, 1e-05
    %v166 = vrsqrt.pop %v162
    %v167 = vrsqrt.pop %v163
    %v168 = vrsqrt.pop %v164
    %v169 = vrsqrt.pop %v165
    %v170 = vmul.f32 %v126, %v166
    %v171 = vmul.f32 %v127, %v167
    %v172 = vmul.f32 %v128, %v168
    %v173 = vmul.f32 %v129, %v169
    %v174 = vld [vmem:[%s1] sm:$0xf]
    %v177 = vunpack.c.l.s4 1966171168
    %v178 = vunpack.c.0.s8 %v177
    %v179 = vlaneseq
    %v180 = vshrl.u32 %v179, 7
    %v181 = vsub.s32 %v178, %v180
    %v182 = vrot.slane %v174, %v181
    %v183 = vcombine.high %v182, %v182
    %v185 = vunpack.c.l.s4 1966171168
    %v186 = vunpack.c.0.s8 %v185
    %v187 = vlaneseq
    %v188 = vshrl.u32 %v187, 7
    %v189 = vsub.s32 %v186, %v188
    %v190 = vrot.slane %v182, %v189
    %v192 = vunpack.c.l.s4 1966171168
    %v193 = vunpack.c.0.s8 %v192
    %v194 = vlaneseq
    %v195 = vshrl.u32 %v194, 7
    %v196 = vsub.s32 %v193, %v195
    %v197 = vrot.slane %v183, %v196
    %v198 = vcombine.high %v190, %v190
    %v199 = vcombine.high %v197, %v197
    %v200 = vlaneseq
    %v201 = vshrl.u32 %v200, 7
    %v202 = vsub.s32 0, %v201
    %v203 = vrot.slane %v190, %v202
    %v204 = vlaneseq
    %v205 = vshrl.u32 %v204, 7
    %v206 = vsub.s32 0, %v205
    %v207 = vrot.slane %v197, %v206
    %v208 = vlaneseq
    %v209 = vshrl.u32 %v208, 7
    %v210 = vsub.s32 0, %v209
    %v211 = vrot.slane %v198, %v210
    %v212 = vlaneseq
    %v213 = vshrl.u32 %v212, 7
    %v214 = vsub.s32 0, %v213
    %v215 = vrot.slane %v199, %v214
    %v220 = vmul.f32 %v170, %v203
    %v221 = vmul.f32 %v171, %v207
    %v222 = vmul.f32 %v172, %v211
    %v223 = vmul.f32 %v173, %v215
    %v224 = vld [vmem:[%s2] sm:$0xf]
    %v227 = vunpack.c.l.s4 1966171168
    %v228 = vunpack.c.0.s8 %v227
    %v229 = vlaneseq
    %v230 = vshrl.u32 %v229, 7
    %v231 = vsub.s32 %v228, %v230
    %v232 = vrot.slane %v224, %v231
    %v233 = vcombine.high %v232, %v232
    %v235 = vunpack.c.l.s4 1966171168
    %v236 = vunpack.c.0.s8 %v235
    %v237 = vlaneseq
    %v238 = vshrl.u32 %v237, 7
    %v239 = vsub.s32 %v236, %v238
    %v240 = vrot.slane %v232, %v239
    %v242 = vunpack.c.l.s4 1966171168
    %v243 = vunpack.c.0.s8 %v242
    %v244 = vlaneseq
    %v245 = vshrl.u32 %v244, 7
    %v246 = vsub.s32 %v243, %v245
    %v247 = vrot.slane %v233, %v246
    %v248 = vcombine.high %v240, %v240
    %v249 = vcombine.high %v247, %v247
    %v250 = vlaneseq
    %v251 = vshrl.u32 %v250, 7
    %v252 = vsub.s32 0, %v251
    %v253 = vrot.slane %v240, %v252
    %v254 = vlaneseq
    %v255 = vshrl.u32 %v254, 7
    %v256 = vsub.s32 0, %v255
    %v257 = vrot.slane %v247, %v256
    %v258 = vlaneseq
    %v259 = vshrl.u32 %v258, 7
    %v260 = vsub.s32 0, %v259
    %v261 = vrot.slane %v248, %v260
    %v262 = vlaneseq
    %v263 = vshrl.u32 %v262, 7
    %v264 = vsub.s32 0, %v263
    %v265 = vrot.slane %v249, %v264
    %v270 = vadd.f32 %v220, %v253
    %v271 = vadd.f32 %v221, %v257
    %v272 = vadd.f32 %v222, %v261
    %v273 = vadd.f32 %v223, %v265
    %v274 = vld [vmem:[#allocation5] sm:$0xff]
    %v275 = vld [vmem:[#allocation5 + $0x8] sm:$0xff]
    %v276 = vld [vmem:[#allocation5 + $0x10] sm:$0xff]
    %v277 = vld [vmem:[#allocation5 + $0x18] sm:$0xff]
    %v278 = vld [vmem:[#allocation5 + $0x20] sm:$0xff]
    %v279 = vld [vmem:[#allocation5 + $0x28] sm:$0xff]
    %v280 = vld [vmem:[#allocation5 + $0x30] sm:$0xff]
    %v281 = vld [vmem:[#allocation5 + $0x38] sm:$0xff]
    %v282 = vld [vmem:[#allocation5 + $0x40] sm:$0xff]
    %v283 = vld [vmem:[#allocation5 + $0x48] sm:$0xff]
    %v284 = vld [vmem:[#allocation5 + $0x50] sm:$0xff]
    %v285 = vld [vmem:[#allocation5 + $0x58] sm:$0xff]
    %v286 = vld [vmem:[#allocation5 + $0x60] sm:$0xff]
    %v287 = vld [vmem:[#allocation5 + $0x68] sm:$0xff]
    %v288 = vld [vmem:[#allocation5 + $0x70] sm:$0xff]
    %v289 = vld [vmem:[#allocation5 + $0x78] sm:$0xff]
    %v290 = vld [vmem:[#allocation5 + $0x80] sm:$0xff]
    %v291 = vld [vmem:[#allocation5 + $0x88] sm:$0xff]
    %v292 = vld [vmem:[#allocation5 + $0x90] sm:$0xff]
    %v293 = vld [vmem:[#allocation5 + $0x98] sm:$0xff]
    %v294 = vld [vmem:[#allocation5 + $0xa0] sm:$0xff]
    %v295 = vld [vmem:[#allocation5 + $0xa8] sm:$0xff]
    %v296 = vld [vmem:[#allocation5 + $0xb0] sm:$0xff]
    %v297 = vld [vmem:[#allocation5 + $0xb8] sm:$0xff]
    %v298 = vld [vmem:[#allocation5 + $0xc0] sm:$0xff]
    %v299 = vld [vmem:[#allocation5 + $0xc8] sm:$0xff]
    %v300 = vld [vmem:[#allocation5 + $0xd0] sm:$0xff]
    %v301 = vld [vmem:[#allocation5 + $0xd8] sm:$0xff]
    %v302 = vld [vmem:[#allocation5 + $0xe0] sm:$0xff]
    %v303 = vld [vmem:[#allocation5 + $0xe8] sm:$0xff]
    %v304 = vld [vmem:[#allocation5 + $0xf0] sm:$0xff]
    %v305 = vld [vmem:[#allocation5 + $0xf8] sm:$0xff]
    %v306 = vld [vmem:[#allocation5 + $0x100] sm:$0xff]
    %v307 = vld [vmem:[#allocation5 + $0x108] sm:$0xff]
    %v308 = vld [vmem:[#allocation5 + $0x110] sm:$0xff]
    %v309 = vld [vmem:[#allocation5 + $0x118] sm:$0xff]
    %v310 = vld [vmem:[#allocation5 + $0x120] sm:$0xff]
    %v311 = vld [vmem:[#allocation5 + $0x128] sm:$0xff]
    %v312 = vld [vmem:[#allocation5 + $0x130] sm:$0xff]
    %v313 = vld [vmem:[#allocation5 + $0x138] sm:$0xff]
    %v314 = vld [vmem:[#allocation5 + $0x140] sm:$0xff]
    %v315 = vld [vmem:[#allocation5 + $0x148] sm:$0xff]
    %v316 = vld [vmem:[#allocation5 + $0x150] sm:$0xff]
    %v317 = vld [vmem:[#allocation5 + $0x158] sm:$0xff]
    %v318 = vld [vmem:[#allocation5 + $0x160] sm:$0xff]
    %v319 = vld [vmem:[#allocation5 + $0x168] sm:$0xff]
    %v320 = vld [vmem:[#allocation5 + $0x170] sm:$0xff]
    %v321 = vld [vmem:[#allocation5 + $0x178] sm:$0xff]
    %v322 = vld [vmem:[#allocation5 + $0x180] sm:$0xff]
    %v323 = vld [vmem:[#allocation5 + $0x188] sm:$0xff]
    %v324 = vld [vmem:[#allocation5 + $0x190] sm:$0xff]
    %v325 = vld [vmem:[#allocation5 + $0x198] sm:$0xff]
    %v326 = vld [vmem:[#allocation5 + $0x1a0] sm:$0xff]
    %v327 = vld [vmem:[#allocation5 + $0x1a8] sm:$0xff]
    %v328 = vld [vmem:[#allocation5 + $0x1b0] sm:$0xff]
    %v329 = vld [vmem:[#allocation5 + $0x1b8] sm:$0xff]
    %v330 = vld [vmem:[#allocation5 + $0x1c0] sm:$0xff]
    %v331 = vld [vmem:[#allocation5 + $0x1c8] sm:$0xff]
    %v332 = vld [vmem:[#allocation5 + $0x1d0] sm:$0xff]
    %v333 = vld [vmem:[#allocation5 + $0x1d8] sm:$0xff]
    %v334 = vld [vmem:[#allocation5 + $0x1e0] sm:$0xff]
    %v335 = vld [vmem:[#allocation5 + $0x1e8] sm:$0xff]
    %v336 = vld [vmem:[#allocation5 + $0x1f0] sm:$0xff]
    %v337 = vld [vmem:[#allocation5 + $0x1f8] sm:$0xff]
    %v338 = vld [vmem:[%s4] sm:$0xf]
    %v341 = vunpack.c.l.s4 1966171168
    %v342 = vunpack.c.0.s8 %v341
    %v343 = vlaneseq
    %v344 = vshrl.u32 %v343, 7
    %v345 = vsub.s32 %v342, %v344
    %v346 = vrot.slane %v338, %v345
    %v347 = vcombine.high %v346, %v346
    %v349 = vunpack.c.l.s4 1966171168
    %v350 = vunpack.c.0.s8 %v349
    %v351 = vlaneseq
    %v352 = vshrl.u32 %v351, 7
    %v353 = vsub.s32 %v350, %v352
    %v354 = vrot.slane %v346, %v353
    %v356 = vunpack.c.l.s4 1966171168
    %v357 = vunpack.c.0.s8 %v356
    %v358 = vlaneseq
    %v359 = vshrl.u32 %v358, 7
    %v360 = vsub.s32 %v357, %v359
    %v361 = vrot.slane %v347, %v360
    %v362 = vcombine.high %v354, %v354
    %v363 = vcombine.high %v361, %v361
    %v364 = vlaneseq
    %v365 = vshrl.u32 %v364, 7
    %v366 = vsub.s32 0, %v365
    %v367 = vrot.slane %v354, %v366
    %v368 = vlaneseq
    %v369 = vshrl.u32 %v368, 7
    %v370 = vsub.s32 0, %v369
    %v371 = vrot.slane %v361, %v370
    %v372 = vlaneseq
    %v373 = vshrl.u32 %v372, 7
    %v374 = vsub.s32 0, %v373
    %v375 = vrot.slane %v362, %v374
    %v376 = vlaneseq
    %v377 = vshrl.u32 %v376, 7
    %v378 = vsub.s32 0, %v377
    %v379 = vrot.slane %v363, %v378
    %384 = vmatprep.subr.mxu0 0.0
    %385 = vmatpush1.msra.mxu0 %v289
    %386 = vmatprep.subr.mxu0 0.0
    %387 = vmatpush1.msra.mxu0 %v288
    %388 = vmatprep.subr.mxu0 0.0
    %389 = vmatpush1.msra.mxu0 %v287
    %390 = vmatprep.subr.mxu0 0.0
    %391 = vmatpush1.msra.mxu0 %v286
    %392 = vmatprep.subr.mxu0 0.0
    %393 = vmatpush1.msra.mxu0 %v285
    %394 = vmatprep.subr.mxu0 0.0
    %395 = vmatpush1.msra.mxu0 %v284
    %396 = vmatprep.subr.mxu0 0.0
    %397 = vmatpush1.msra.mxu0 %v283
    %398 = vmatprep.subr.mxu0 0.0
    %399 = vmatpush1.msra.mxu0 %v282
    %400 = vmatprep.subr.mxu0 0.0
    %401 = vmatpush1.msra.mxu0 %v281
    %402 = vmatprep.subr.mxu0 0.0
    %403 = vmatpush1.msra.mxu0 %v280
    %404 = vmatprep.subr.mxu0 0.0
    %405 = vmatpush1.msra.mxu0 %v279
    %406 = vmatprep.subr.mxu0 0.0
    %407 = vmatpush1.msra.mxu0 %v278
    %408 = vmatprep.subr.mxu0 0.0
    %409 = vmatpush1.msra.mxu0 %v277
    %410 = vmatprep.subr.mxu0 0.0
    %411 = vmatpush1.msra.mxu0 %v276
    %412 = vmatprep.subr.mxu0 0.0
    %413 = vmatpush1.msra.mxu0 %v275
    %414 = vmatprep.subr.mxu0 0.0
    %415 = vmatpush1.msra.mxu0 %v274
    %416 = vmatprep.subr.mxu0 0.0
    %417 = vmatpush2.msra.mxu0 0.0
    %418 = vmatprep.subr.mxu0 0.0
    %419 = vmatpush2.msra.mxu0 0.0
    %420 = vmatprep.subr.mxu0 0.0
    %421 = vmatpush2.msra.mxu0 0.0
    %422 = vmatprep.subr.mxu0 0.0
    %423 = vmatpush2.msra.mxu0 0.0
    %424 = vmatprep.subr.mxu0 0.0
    %425 = vmatpush2.msra.mxu0 0.0
    %426 = vmatprep.subr.mxu0 0.0
    %427 = vmatpush2.msra.mxu0 0.0
    %428 = vmatprep.subr.mxu0 0.0
    %429 = vmatpush2.msra.mxu0 0.0
    %430 = vmatprep.subr.mxu0 0.0
    %431 = vmatpush2.msra.mxu0 0.0
    %432 = vmatprep.subr.mxu0 0.0
    %433 = vmatpush2.msra.mxu0 0.0
    %434 = vmatprep.subr.mxu0 0.0
    %435 = vmatpush2.msra.mxu0 0.0
    %436 = vmatprep.subr.mxu0 0.0
    %437 = vmatpush2.msra.mxu0 0.0
    %438 = vmatprep.subr.mxu0 0.0
    %439 = vmatpush2.msra.mxu0 0.0
    %440 = vmatprep.subr.mxu0 0.0
    %441 = vmatpush2.msra.mxu0 0.0
    %442 = vmatprep.subr.mxu0 0.0
    %443 = vmatpush2.msra.mxu0 0.0
    %444 = vmatprep.subr.mxu0 0.0
    %445 = vmatpush2.msra.mxu0 0.0
    %446 = vmatprep.subr.mxu0 0.0
    %447 = vmatpush2.msra.mxu0 0.0
    %448 = vmatprep.mubr.f32.mxu0 0.0
    %449 = vmatmul.mubr.f32.gmra.mxu0 %v270
    %v450 = vpop.f32.mrf.mxu0
    %v451 = vadd.f32 %v367, %v450
    %v452 = vpop.f32.mrf.mxu0
    %453 = vdwg.mxu0
    %454 = vmatprep.subr.mxu0 0.0
    %455 = vmatpush1.msra.mxu0 %v305
    %456 = vmatprep.subr.mxu0 0.0
    %457 = vmatpush1.msra.mxu0 %v304
    %458 = vmatprep.subr.mxu0 0.0
    %459 = vmatpush1.msra.mxu0 %v303
    %460 = vmatprep.subr.mxu0 0.0
    %461 = vmatpush1.msra.mxu0 %v302
    %462 = vmatprep.subr.mxu0 0.0
    %463 = vmatpush1.msra.mxu0 %v301
    %464 = vmatprep.subr.mxu0 0.0
    %465 = vmatpush1.msra.mxu0 %v300
    %466 = vmatprep.subr.mxu0 0.0
    %467 = vmatpush1.msra.mxu0 %v299
    %468 = vmatprep.subr.mxu0 0.0
    %469 = vmatpush1.msra.mxu0 %v298
    %470 = vmatprep.subr.mxu0 0.0
    %471 = vmatpush1.msra.mxu0 %v297
    %472 = vmatprep.subr.mxu0 0.0
    %473 = vmatpush1.msra.mxu0 %v296
    %474 = vmatprep.subr.mxu0 0.0
    %475 = vmatpush1.msra.mxu0 %v295
    %476 = vmatprep.subr.mxu0 0.0
    %477 = vmatpush1.msra.mxu0 %v294
    %478 = vmatprep.subr.mxu0 0.0
    %479 = vmatpush1.msra.mxu0 %v293
    %480 = vmatprep.subr.mxu0 0.0
    %481 = vmatpush1.msra.mxu0 %v292
    %482 = vmatprep.subr.mxu0 0.0
    %483 = vmatpush1.msra.mxu0 %v291
    %484 = vmatprep.subr.mxu0 0.0
    %485 = vmatpush1.msra.mxu0 %v290
    %486 = vmatprep.subr.mxu0 0.0
    %487 = vmatpush2.msra.mxu0 0.0
    %488 = vmatprep.subr.mxu0 0.0
    %489 = vmatpush2.msra.mxu0 0.0
    %490 = vmatprep.subr.mxu0 0.0
    %491 = vmatpush2.msra.mxu0 0.0
    %492 = vmatprep.subr.mxu0 0.0
    %493 = vmatpush2.msra.mxu0 0.0
    %494 = vmatprep.subr.mxu0 0.0
    %495 = vmatpush2.msra.mxu0 0.0
    %496 = vmatprep.subr.mxu0 0.0
    %497 = vmatpush2.msra.mxu0 0.0
    %498 = vmatprep.subr.mxu0 0.0
    %499 = vmatpush2.msra.mxu0 0.0
    %500 = vmatprep.subr.mxu0 0.0
    %501 = vmatpush2.msra.mxu0 0.0
    %502 = vmatprep.subr.mxu0 0.0
    %503 = vmatpush2.msra.mxu0 0.0
    %504 = vmatprep.subr.mxu0 0.0
    %505 = vmatpush2.msra.mxu0 0.0
    %506 = vmatprep.subr.mxu0 0.0
    %507 = vmatpush2.msra.mxu0 0.0
    %508 = vmatprep.subr.mxu0 0.0
    %509 = vmatpush2.msra.mxu0 0.0
    %510 = vmatprep.subr.mxu0 0.0
    %511 = vmatpush2.msra.mxu0 0.0
    %512 = vmatprep.subr.mxu0 0.0
    %513 = vmatpush2.msra.mxu0 0.0
    %514 = vmatprep.subr.mxu0 0.0
    %515 = vmatpush2.msra.mxu0 0.0
    %516 = vmatprep.subr.mxu0 0.0
    %517 = vmatpush2.msra.mxu0 0.0
    %518 = vmatprep.mubr.f32.mxu0 0.0
    %519 = vmatmul.mubr.f32.gmra.mxu0 %v271
    %v520 = vpop.f32.mrf.mxu0
    %v521 = vadd.f32 %v371, %v520
    %v522 = vpop.f32.mrf.mxu0
    %523 = vdwg.mxu0
    %524 = vmatprep.subr.mxu0 0.0
    %525 = vmatpush1.msra.mxu0 %v321
    %526 = vmatprep.subr.mxu0 0.0
    %527 = vmatpush1.msra.mxu0 %v320
    %528 = vmatprep.subr.mxu0 0.0
    %529 = vmatpush1.msra.mxu0 %v319
    %530 = vmatprep.subr.mxu0 0.0
    %531 = vmatpush1.msra.mxu0 %v318
    %532 = vmatprep.subr.mxu0 0.0
    %533 = vmatpush1.msra.mxu0 %v317
    %534 = vmatprep.subr.mxu0 0.0
    %535 = vmatpush1.msra.mxu0 %v316
    %536 = vmatprep.subr.mxu0 0.0
    %537 = vmatpush1.msra.mxu0 %v315
    %538 = vmatprep.subr.mxu0 0.0
    %539 = vmatpush1.msra.mxu0 %v314
    %540 = vmatprep.subr.mxu0 0.0
    %541 = vmatpush1.msra.mxu0 %v313
    %542 = vmatprep.subr.mxu0 0.0
    %543 = vmatpush1.msra.mxu0 %v312
    %544 = vmatprep.subr.mxu0 0.0
    %545 = vmatpush1.msra.mxu0 %v311
    %546 = vmatprep.subr.mxu0 0.0
    %547 = vmatpush1.msra.mxu0 %v310
    %548 = vmatprep.subr.mxu0 0.0
    %549 = vmatpush1.msra.mxu0 %v309
    %550 = vmatprep.subr.mxu0 0.0
    %551 = vmatpush1.msra.mxu0 %v308
    %552 = vmatprep.subr.mxu0 0.0
    %553 = vmatpush1.msra.mxu0 %v307
    %554 = vmatprep.subr.mxu0 0.0
    %555 = vmatpush1.msra.mxu0 %v306
    %556 = vmatprep.subr.mxu0 0.0
    %557 = vmatpush2.msra.mxu0 0.0
    %558 = vmatprep.subr.mxu0 0.0
    %559 = vmatpush2.msra.mxu0 0.0
    %560 = vmatprep.subr.mxu0 0.0
    %561 = vmatpush2.msra.mxu0 0.0
    %562 = vmatprep.subr.mxu0 0.0
    %563 = vmatpush2.msra.mxu0 0.0
    %564 = vmatprep.subr.mxu0 0.0
    %565 = vmatpush2.msra.mxu0 0.0
    %566 = vmatprep.subr.mxu0 0.0
    %567 = vmatpush2.msra.mxu0 0.0
    %568 = vmatprep.subr.mxu0 0.0
    %569 = vmatpush2.msra.mxu0 0.0
    %570 = vmatprep.subr.mxu0 0.0
    %571 = vmatpush2.msra.mxu0 0.0
    %572 = vmatprep.subr.mxu0 0.0
    %573 = vmatpush2.msra.mxu0 0.0
    %574 = vmatprep.subr.mxu0 0.0
    %575 = vmatpush2.msra.mxu0 0.0
    %576 = vmatprep.subr.mxu0 0.0
    %577 = vmatpush2.msra.mxu0 0.0
    %578 = vmatprep.subr.mxu0 0.0
    %579 = vmatpush2.msra.mxu0 0.0
    %580 = vmatprep.subr.mxu0 0.0
    %581 = vmatpush2.msra.mxu0 0.0
    %582 = vmatprep.subr.mxu0 0.0
    %583 = vmatpush2.msra.mxu0 0.0
    %584 = vmatprep.subr.mxu0 0.0
    %585 = vmatpush2.msra.mxu0 0.0
    %586 = vmatprep.subr.mxu0 0.0
    %587 = vmatpush2.msra.mxu0 0.0
    %588 = vmatprep.mubr.f32.mxu0 0.0
    %589 = vmatmul.mubr.f32.gmra.mxu0 %v272
    %v590 = vpop.f32.mrf.mxu0
    %v591 = vadd.f32 %v375, %v590
    %v592 = vpop.f32.mrf.mxu0
    %593 = vdwg.mxu0
    %594 = vmatprep.subr.mxu0 0.0
    %595 = vmatpush1.msra.mxu0 %v337
    %596 = vmatprep.subr.mxu0 0.0
    %597 = vmatpush1.msra.mxu0 %v336
    %598 = vmatprep.subr.mxu0 0.0
    %599 = vmatpush1.msra.mxu0 %v335
    %600 = vmatprep.subr.mxu0 0.0
    %601 = vmatpush1.msra.mxu0 %v334
    %602 = vmatprep.subr.mxu0 0.0
    %603 = vmatpush1.msra.mxu0 %v333
    %604 = vmatprep.subr.mxu0 0.0
    %605 = vmatpush1.msra.mxu0 %v332
    %606 = vmatprep.subr.mxu0 0.0
    %607 = vmatpush1.msra.mxu0 %v331
    %608 = vmatprep.subr.mxu0 0.0
    %609 = vmatpush1.msra.mxu0 %v330
    %610 = vmatprep.subr.mxu0 0.0
    %611 = vmatpush1.msra.mxu0 %v329
    %612 = vmatprep.subr.mxu0 0.0
    %613 = vmatpush1.msra.mxu0 %v328
    %614 = vmatprep.subr.mxu0 0.0
    %615 = vmatpush1.msra.mxu0 %v327
    %616 = vmatprep.subr.mxu0 0.0
    %617 = vmatpush1.msra.mxu0 %v326
    %618 = vmatprep.subr.mxu0 0.0
    %619 = vmatpush1.msra.mxu0 %v325
    %620 = vmatprep.subr.mxu0 0.0
    %621 = vmatpush1.msra.mxu0 %v324
    %622 = vmatprep.subr.mxu0 0.0
    %623 = vmatpush1.msra.mxu0 %v323
    %624 = vmatprep.subr.mxu0 0.0
    %625 = vmatpush1.msra.mxu0 %v322
    %626 = vmatprep.subr.mxu0 0.0
    %627 = vmatpush2.msra.mxu0 0.0
    %628 = vmatprep.subr.mxu0 0.0
    %629 = vmatpush2.msra.mxu0 0.0
    %630 = vmatprep.subr.mxu0 0.0
    %631 = vmatpush2.msra.mxu0 0.0
    %632 = vmatprep.subr.mxu0 0.0
    %633 = vmatpush2.msra.mxu0 0.0
    %634 = vmatprep.subr.mxu0 0.0
    %635 = vmatpush2.msra.mxu0 0.0
    %636 = vmatprep.subr.mxu0 0.0
    %637 = vmatpush2.msra.mxu0 0.0
    %638 = vmatprep.subr.mxu0 0.0
    %639 = vmatpush2.msra.mxu0 0.0
    %640 = vmatprep.subr.mxu0 0.0
    %641 = vmatpush2.msra.mxu0 0.0
    %642 = vmatprep.subr.mxu0 0.0
    %643 = vmatpush2.msra.mxu0 0.0
    %644 = vmatprep.subr.mxu0 0.0
    %645 = vmatpush2.msra.mxu0 0.0
    %646 = vmatprep.subr.mxu0 0.0
    %647 = vmatpush2.msra.mxu0 0.0
    %648 = vmatprep.subr.mxu0 0.0
    %649 = vmatpush2.msra.mxu0 0.0
    %650 = vmatprep.subr.mxu0 0.0
    %651 = vmatpush2.msra.mxu0 0.0
    %652 = vmatprep.subr.mxu0 0.0
    %653 = vmatpush2.msra.mxu0 0.0
    %654 = vmatprep.subr.mxu0 0.0
    %655 = vmatpush2.msra.mxu0 0.0
    %656 = vmatprep.subr.mxu0 0.0
    %657 = vmatpush2.msra.mxu0 0.0
    %658 = vmatprep.mubr.f32.mxu0 0.0
    %659 = vmatmul.mubr.f32.gmra.mxu0 %v273
    %v660 = vpop.f32.mrf.mxu0
    %v661 = vadd.f32 %v379, %v660
    %v662 = vpop.f32.mrf.mxu0
    %663 = vdwg.mxu0
    %v664 = vmax.f32 %v451, 0.0
    %v665 = vmax.f32 %v521, 0.0
    %v666 = vmax.f32 %v591, 0.0
    %v667 = vmax.f32 %v661, 0.0
    %v668 = vld [vmem:[#allocation7] sm:$0xff]
    %v669 = vld [vmem:[#allocation7 + $0x8] sm:$0xff]
    %v670 = vld [vmem:[#allocation7 + $0x10] sm:$0xff]
    %v671 = vld [vmem:[#allocation7 + $0x18] sm:$0xff]
    %v672 = vld [vmem:[#allocation7 + $0x20] sm:$0xff]
    %v673 = vld [vmem:[#allocation7 + $0x28] sm:$0xff]
    %v674 = vld [vmem:[#allocation7 + $0x30] sm:$0xff]
    %v675 = vld [vmem:[#allocation7 + $0x38] sm:$0xff]
    %v676 = vld [vmem:[#allocation7 + $0x40] sm:$0xff]
    %v677 = vld [vmem:[#allocation7 + $0x48] sm:$0xff]
    %v678 = vld [vmem:[#allocation7 + $0x50] sm:$0xff]
    %v679 = vld [vmem:[#allocation7 + $0x58] sm:$0xff]
    %v680 = vld [vmem:[#allocation7 + $0x60] sm:$0xff]
    %v681 = vld [vmem:[#allocation7 + $0x68] sm:$0xff]
    %v682 = vld [vmem:[#allocation7 + $0x70] sm:$0xff]
    %v683 = vld [vmem:[#allocation7 + $0x78] sm:$0xff]
    %v684 = vld [vmem:[%s6] sm:$0x1]
    %v686 = vlaneseq
    %v687 = vshrl.u32 %v686, 7
    %v688 = vsub.s32 0, %v687
    %v689 = vrot.slane %v684, %v688
    %691 = vmatprep.subr.mxu0 0.0
    %692 = vmatpush1.msra.mxu0 %v683
    %693 = vmatprep.subr.mxu0 0.0
    %694 = vmatpush1.msra.mxu0 %v682
    %695 = vmatprep.subr.mxu0 0.0
    %696 = vmatpush1.msra.mxu0 %v681
    %697 = vmatprep.subr.mxu0 0.0
    %698 = vmatpush1.msra.mxu0 %v680
    %699 = vmatprep.subr.mxu0 0.0
    %700 = vmatpush1.msra.mxu0 %v679
    %701 = vmatprep.subr.mxu0 0.0
    %702 = vmatpush1.msra.mxu0 %v678
    %703 = vmatprep.subr.mxu0 0.0
    %704 = vmatpush1.msra.mxu0 %v677
    %705 = vmatprep.subr.mxu0 0.0
    %706 = vmatpush1.msra.mxu0 %v676
    %707 = vmatprep.subr.mxu0 0.0
    %708 = vmatpush1.msra.mxu0 %v675
    %709 = vmatprep.subr.mxu0 0.0
    %710 = vmatpush1.msra.mxu0 %v674
    %711 = vmatprep.subr.mxu0 0.0
    %712 = vmatpush1.msra.mxu0 %v673
    %713 = vmatprep.subr.mxu0 0.0
    %714 = vmatpush1.msra.mxu0 %v672
    %715 = vmatprep.subr.mxu0 0.0
    %716 = vmatpush1.msra.mxu0 %v671
    %717 = vmatprep.subr.mxu0 0.0
    %718 = vmatpush1.msra.mxu0 %v670
    %719 = vmatprep.subr.mxu0 0.0
    %720 = vmatpush1.msra.mxu0 %v669
    %721 = vmatprep.subr.mxu0 0.0
    %722 = vmatpush1.msra.mxu0 %v668
    %723 = vmatprep.subr.mxu0 0.0
    %724 = vmatpush2.msra.mxu0 0.0
    %725 = vmatprep.subr.mxu0 0.0
    %726 = vmatpush2.msra.mxu0 0.0
    %727 = vmatprep.subr.mxu0 0.0
    %728 = vmatpush2.msra.mxu0 0.0
    %729 = vmatprep.subr.mxu0 0.0
    %730 = vmatpush2.msra.mxu0 0.0
    %731 = vmatprep.subr.mxu0 0.0
    %732 = vmatpush2.msra.mxu0 0.0
    %733 = vmatprep.subr.mxu0 0.0
    %734 = vmatpush2.msra.mxu0 0.0
    %735 = vmatprep.subr.mxu0 0.0
    %736 = vmatpush2.msra.mxu0 0.0
    %737 = vmatprep.subr.mxu0 0.0
    %738 = vmatpush2.msra.mxu0 0.0
    %739 = vmatprep.subr.mxu0 0.0
    %740 = vmatpush2.msra.mxu0 0.0
    %741 = vmatprep.subr.mxu0 0.0
    %742 = vmatpush2.msra.mxu0 0.0
    %743 = vmatprep.subr.mxu0 0.0
    %744 = vmatpush2.msra.mxu0 0.0
    %745 = vmatprep.subr.mxu0 0.0
    %746 = vmatpush2.msra.mxu0 0.0
    %747 = vmatprep.subr.mxu0 0.0
    %748 = vmatpush2.msra.mxu0 0.0
    %749 = vmatprep.subr.mxu0 0.0
    %750 = vmatpush2.msra.mxu0 0.0
    %751 = vmatprep.subr.mxu0 0.0
    %752 = vmatpush2.msra.mxu0 0.0
    %753 = vmatprep.subr.mxu0 0.0
    %754 = vmatpush2.msra.mxu0 0.0
    %755 = vmatprep.mubr.f32.mxu0 0.0
    %756 = vmatmul.mubr.f32.gmra.mxu0 %v664
    %v757 = vpop.f32.mrf.mxu0
    %v758 = vadd.f32 %v689, %v757
    %v759 = vpop.f32.mrf.mxu0
    %760 = vmatprep.mubr.f32.mxu0 0.0
    %761 = vmatmul.mubr.f32.gmra.mxu0 %v665
    %v762 = vpop.f32.mrf.mxu0
    %v763 = vadd.f32 %v689, %v762
    %v764 = vpop.f32.mrf.mxu0
    %765 = vmatprep.mubr.f32.mxu0 0.0
    %766 = vmatmul.mubr.f32.gmra.mxu0 %v666
    %v767 = vpop.f32.mrf.mxu0
    %v768 = vadd.f32 %v689, %v767
    %v769 = vpop.f32.mrf.mxu0
    %770 = vmatprep.mubr.f32.mxu0 0.0
    %771 = vmatmul.mubr.f32.gmra.mxu0 %v667
    %v772 = vpop.f32.mrf.mxu0
    %v773 = vadd.f32 %v689, %v772
    %v774 = vpop.f32.mrf.mxu0
    %775 = vdwg.mxu0
    %v776 = vld [vmem:[#allocation8] sm:$0xff]
    %v777 = vld [vmem:[#allocation8 + $0x8] sm:$0xff]
    %v778 = vld [vmem:[#allocation8 + $0x10] sm:$0xff]
    %v779 = vld [vmem:[#allocation8 + $0x18] sm:$0xff]
    %v780 = vld [vmem:[#allocation8 + $0x20] sm:$0xff]
    %v781 = vld [vmem:[#allocation8 + $0x28] sm:$0xff]
    %v782 = vld [vmem:[#allocation8 + $0x30] sm:$0xff]
    %v783 = vld [vmem:[#allocation8 + $0x38] sm:$0xff]
    %v784 = vld [vmem:[#allocation8 + $0x40] sm:$0xff]
    %v785 = vld [vmem:[#allocation8 + $0x48] sm:$0xff]
    %v786 = vld [vmem:[#allocation8 + $0x50] sm:$0xff]
    %v787 = vld [vmem:[#allocation8 + $0x58] sm:$0xff]
    %v788 = vld [vmem:[#allocation8 + $0x60] sm:$0xff]
    %v789 = vld [vmem:[#allocation8 + $0x68] sm:$0xff]
    %v790 = vld [vmem:[#allocation8 + $0x70] sm:$0xff]
    %v791 = vld [vmem:[#allocation8 + $0x78] sm:$0xff]
    %v792 = vld [vmem:[%s8] sm:$0x1]
    %v794 = vlaneseq
    %v795 = vshrl.u32 %v794, 7
    %v796 = vsub.s32 0, %v795
    %v797 = vrot.slane %v792, %v796
    %v799 = vadd.f32 %v758, %v797
    %v800 = vmax.f32 %v799, 0.0
    %801 = vst [vmem:[#allocation10] sm:$0xff] %v800
    %802 = vmatprep.subr.mxu0 0.0
    %803 = vmatpush1.msra.mxu0 %v791
    %804 = vmatprep.subr.mxu0 0.0
    %805 = vmatpush1.msra.mxu0 %v790
    %806 = vmatprep.subr.mxu0 0.0
    %807 = vmatpush1.msra.mxu0 %v789
    %808 = vmatprep.subr.mxu0 0.0
    %809 = vmatpush1.msra.mxu0 %v788
    %810 = vmatprep.subr.mxu0 0.0
    %811 = vmatpush1.msra.mxu0 %v787
    %812 = vmatprep.subr.mxu0 0.0
    %813 = vmatpush1.msra.mxu0 %v786
    %814 = vmatprep.subr.mxu0 0.0
    %815 = vmatpush1.msra.mxu0 %v785
    %816 = vmatprep.subr.mxu0 0.0
    %817 = vmatpush1.msra.mxu0 %v784
    %818 = vmatprep.subr.mxu0 0.0
    %819 = vmatpush1.msra.mxu0 %v783
    %820 = vmatprep.subr.mxu0 0.0
    %821 = vmatpush1.msra.mxu0 %v782
    %822 = vmatprep.subr.mxu0 0.0
    %823 = vmatpush1.msra.mxu0 %v781
    %824 = vmatprep.subr.mxu0 0.0
    %825 = vmatpush1.msra.mxu0 %v780
    %826 = vmatprep.subr.mxu0 0.0
    %827 = vmatpush1.msra.mxu0 %v779
    %828 = vmatprep.subr.mxu0 0.0
    %829 = vmatpush1.msra.mxu0 %v778
    %830 = vmatprep.subr.mxu0 0.0
    %831 = vmatpush1.msra.mxu0 %v777
    %832 = vmatprep.subr.mxu0 0.0
    %833 = vmatpush1.msra.mxu0 %v776
    %834 = vmatprep.subr.mxu0 0.0
    %835 = vmatpush2.msra.mxu0 0.0
    %836 = vmatprep.subr.mxu0 0.0
    %837 = vmatpush2.msra.mxu0 0.0
    %838 = vmatprep.subr.mxu0 0.0
    %839 = vmatpush2.msra.mxu0 0.0
    %840 = vmatprep.subr.mxu0 0.0
    %841 = vmatpush2.msra.mxu0 0.0
    %842 = vmatprep.subr.mxu0 0.0
    %843 = vmatpush2.msra.mxu0 0.0
    %844 = vmatprep.subr.mxu0 0.0
    %845 = vmatpush2.msra.mxu0 0.0
    %846 = vmatprep.subr.mxu0 0.0
    %847 = vmatpush2.msra.mxu0 0.0
    %848 = vmatprep.subr.mxu0 0.0
    %849 = vmatpush2.msra.mxu0 0.0
    %850 = vmatprep.subr.mxu0 0.0
    %851 = vmatpush2.msra.mxu0 0.0
    %852 = vmatprep.subr.mxu0 0.0
    %853 = vmatpush2.msra.mxu0 0.0
    %854 = vmatprep.subr.mxu0 0.0
    %855 = vmatpush2.msra.mxu0 0.0
    %856 = vmatprep.subr.mxu0 0.0
    %857 = vmatpush2.msra.mxu0 0.0
    %858 = vmatprep.subr.mxu0 0.0
    %859 = vmatpush2.msra.mxu0 0.0
    %860 = vmatprep.subr.mxu0 0.0
    %861 = vmatpush2.msra.mxu0 0.0
    %862 = vmatprep.subr.mxu0 0.0
    %863 = vmatpush2.msra.mxu0 0.0
    %864 = vmatprep.subr.mxu0 0.0
    %865 = vmatpush2.msra.mxu0 0.0
    %866 = vmatprep.mubr.f32.mxu0 0.0
    %867 = vmatmul.mubr.f32.gmra.mxu0 %v800
    %v868 = vpop.f32.mrf.mxu0
    %v869 = vadd.f32 %v797, %v868
    %v870 = vpop.f32.mrf.mxu0
    %871 = vdwg.mxu0
    %v872 = vadd.f32 %v763, %v869
    %v873 = vmax.f32 %v872, 0.0
    %s874 = scalar_lea.vmem [#allocation10], 8
    %875 = vst [vmem:[%s874] sm:$0xff] %v873
    %876 = vmatprep.subr.mxu0 0.0
    %877 = vmatpush1.msra.mxu0 %v791
    %878 = vmatprep.subr.mxu0 0.0
    %879 = vmatpush1.msra.mxu0 %v790
    %880 = vmatprep.subr.mxu0 0.0
    %881 = vmatpush1.msra.mxu0 %v789
    %882 = vmatprep.subr.mxu0 0.0
    %883 = vmatpush1.msra.mxu0 %v788
    %884 = vmatprep.subr.mxu0 0.0
    %885 = vmatpush1.msra.mxu0 %v787
    %886 = vmatprep.subr.mxu0 0.0
    %887 = vmatpush1.msra.mxu0 %v786
    %888 = vmatprep.subr.mxu0 0.0
    %889 = vmatpush1.msra.mxu0 %v785
    %890 = vmatprep.subr.mxu0 0.0
    %891 = vmatpush1.msra.mxu0 %v784
    %892 = vmatprep.subr.mxu0 0.0
    %893 = vmatpush1.msra.mxu0 %v783
    %894 = vmatprep.subr.mxu0 0.0
    %895 = vmatpush1.msra.mxu0 %v782
    %896 = vmatprep.subr.mxu0 0.0
    %897 = vmatpush1.msra.mxu0 %v781
    %898 = vmatprep.subr.mxu0 0.0
    %899 = vmatpush1.msra.mxu0 %v780
    %900 = vmatprep.subr.mxu0 0.0
    %901 = vmatpush1.msra.mxu0 %v779
    %902 = vmatprep.subr.mxu0 0.0
    %903 = vmatpush1.msra.mxu0 %v778
    %904 = vmatprep.subr.mxu0 0.0
    %905 = vmatpush1.msra.mxu0 %v777
    %906 = vmatprep.subr.mxu0 0.0
    %907 = vmatpush1.msra.mxu0 %v776
    %908 = vmatprep.subr.mxu0 0.0
    %909 = vmatpush2.msra.mxu0 0.0
    %910 = vmatprep.subr.mxu0 0.0
    %911 = vmatpush2.msra.mxu0 0.0
    %912 = vmatprep.subr.mxu0 0.0
    %913 = vmatpush2.msra.mxu0 0.0
    %914 = vmatprep.subr.mxu0 0.0
    %915 = vmatpush2.msra.mxu0 0.0
    %916 = vmatprep.subr.mxu0 0.0
    %917 = vmatpush2.msra.mxu0 0.0
    %918 = vmatprep.subr.mxu0 0.0
    %919 = vmatpush2.msra.mxu0 0.0
    %920 = vmatprep.subr.mxu0 0.0
    %921 = vmatpush2.msra.mxu0 0.0
    %922 = vmatprep.subr.mxu0 0.0
    %923 = vmatpush2.msra.mxu0 0.0
    %924 = vmatprep.subr.mxu0 0.0
    %925 = vmatpush2.msra.mxu0 0.0
    %926 = vmatprep.subr.mxu0 0.0
    %927 = vmatpush2.msra.mxu0 0.0
    %928 = vmatprep.subr.mxu0 0.0
    %929 = vmatpush2.msra.mxu0 0.0
    %930 = vmatprep.subr.mxu0 0.0
    %931 = vmatpush2.msra.mxu0 0.0
    %932 = vmatprep.subr.mxu0 0.0
    %933 = vmatpush2.msra.mxu0 0.0
    %934 = vmatprep.subr.mxu0 0.0
    %935 = vmatpush2.msra.mxu0 0.0
    %936 = vmatprep.subr.mxu0 0.0
    %937 = vmatpush2.msra.mxu0 0.0
    %938 = vmatprep.subr.mxu0 0.0
    %939 = vmatpush2.msra.mxu0 0.0
    %940 = vmatprep.mubr.f32.mxu0 0.0
    %941 = vmatmul.mubr.f32.gmra.mxu0 %v873
    %v942 = vpop.f32.mrf.mxu0
    %v943 = vadd.f32 %v797, %v942
    %v944 = vpop.f32.mrf.mxu0
    %945 = vdwg.mxu0
    %v946 = vadd.f32 %v768, %v943
    %v947 = vmax.f32 %v946, 0.0
    %s948 = scalar_lea.vmem [#allocation10], 16
    %949 = vst [vmem:[%s948] sm:$0xff] %v947
    %950 = vmatprep.subr.mxu0 0.0
    %951 = vmatpush1.msra.mxu0 %v791
    %952 = vmatprep.subr.mxu0 0.0
    %953 = vmatpush1.msra.mxu0 %v790
    %954 = vmatprep.subr.mxu0 0.0
    %955 = vmatpush1.msra.mxu0 %v789
    %956 = vmatprep.subr.mxu0 0.0
    %957 = vmatpush1.msra.mxu0 %v788
    %958 = vmatprep.subr.mxu0 0.0
    %959 = vmatpush1.msra.mxu0 %v787
    %960 = vmatprep.subr.mxu0 0.0
    %961 = vmatpush1.msra.mxu0 %v786
    %962 = vmatprep.subr.mxu0 0.0
    %963 = vmatpush1.msra.mxu0 %v785
    %964 = vmatprep.subr.mxu0 0.0
    %965 = vmatpush1.msra.mxu0 %v784
    %966 = vmatprep.subr.mxu0 0.0
    %967 = vmatpush1.msra.mxu0 %v783
    %968 = vmatprep.subr.mxu0 0.0
    %969 = vmatpush1.msra.mxu0 %v782
    %970 = vmatprep.subr.mxu0 0.0
    %971 = vmatpush1.msra.mxu0 %v781
    %972 = vmatprep.subr.mxu0 0.0
    %973 = vmatpush1.msra.mxu0 %v780
    %974 = vmatprep.subr.mxu0 0.0
    %975 = vmatpush1.msra.mxu0 %v779
    %976 = vmatprep.subr.mxu0 0.0
    %977 = vmatpush1.msra.mxu0 %v778
    %978 = vmatprep.subr.mxu0 0.0
    %979 = vmatpush1.msra.mxu0 %v777
    %980 = vmatprep.subr.mxu0 0.0
    %981 = vmatpush1.msra.mxu0 %v776
    %982 = vmatprep.subr.mxu0 0.0
    %983 = vmatpush2.msra.mxu0 0.0
    %984 = vmatprep.subr.mxu0 0.0
    %985 = vmatpush2.msra.mxu0 0.0
    %986 = vmatprep.subr.mxu0 0.0
    %987 = vmatpush2.msra.mxu0 0.0
    %988 = vmatprep.subr.mxu0 0.0
    %989 = vmatpush2.msra.mxu0 0.0
    %990 = vmatprep.subr.mxu0 0.0
    %991 = vmatpush2.msra.mxu0 0.0
    %992 = vmatprep.subr.mxu0 0.0
    %993 = vmatpush2.msra.mxu0 0.0
    %994 = vmatprep.subr.mxu0 0.0
    %995 = vmatpush2.msra.mxu0 0.0
    %996 = vmatprep.subr.mxu0 0.0
    %997 = vmatpush2.msra.mxu0 0.0
    %998 = vmatprep.subr.mxu0 0.0
    %999 = vmatpush2.msra.mxu0 0.0
    %1000 = vmatprep.subr.mxu0 0.0
    %1001 = vmatpush2.msra.mxu0 0.0
    %1002 = vmatprep.subr.mxu0 0.0
    %1003 = vmatpush2.msra.mxu0 0.0
    %1004 = vmatprep.subr.mxu0 0.0
    %1005 = vmatpush2.msra.mxu0 0.0
    %1006 = vmatprep.subr.mxu0 0.0
    %1007 = vmatpush2.msra.mxu0 0.0
    %1008 = vmatprep.subr.mxu0 0.0
    %1009 = vmatpush2.msra.mxu0 0.0
    %1010 = vmatprep.subr.mxu0 0.0
    %1011 = vmatpush2.msra.mxu0 0.0
    %1012 = vmatprep.subr.mxu0 0.0
    %1013 = vmatpush2.msra.mxu0 0.0
    %1014 = vmatprep.mubr.f32.mxu0 0.0
    %1015 = vmatmul.mubr.f32.gmra.mxu0 %v947
    %v1016 = vpop.f32.mrf.mxu0
    %v1017 = vadd.f32 %v797, %v1016
    %v1018 = vpop.f32.mrf.mxu0
    %1019 = vdwg.mxu0
    %v1020 = vadd.f32 %v773, %v1017
    %v1021 = vmax.f32 %v1020, 0.0
    %s1022 = scalar_lea.vmem [#allocation10], 24
    %1023 = vst [vmem:[%s1022] sm:$0xff] %v1021
    %v1024 = vld [vmem:[%s9] sm:$0xff]
    %v1025 = vld [vmem:[%s9 + $0x8] sm:$0x3]
    %v1026 = vmax.f32 %v1024, 0.0
    %v1027 = vmax.f32 %v1025, 0.0
    %vm1028 = vcmask 48128
    %1029 = vst.msk [vmem:[%s11] sm:$0xff] %vm1028, %v1026
    %vm1030 = vcmask 41984
    %1031 = vst.msk [vmem:[%s11 + $0x8] sm:$0x3] %vm1030, %v1027
    // Predicated region
    $region58: #{tpu_custom_call.1} parent=1 // pred_check
      _
    $region59: #{tpu_custom_call.1} parent=1 // pred_check_branch
      %1033 = sbr.rel (0) target = $region61
    $region60: #{tpu_custom_call.1} parent=1 // pred_region
      %s1035 = ssub.s32 512, 512
      %1036 = vsyncadd [#allocation4], %s1035
      %s1037 = sshll.u32 [#allocation10], 4
      %s1038 = int_to_ptr.vmem [resolvable:$true] %s1037
      %1043 = dma.vmem_to_hbm [thread:$0]  %s1038, 512, %s10, [#allocation4], 128, 128, 8
    $region61: #{tpu_custom_call.1} parent=1 // pred_fallthru
      _
    // Predicated region
    $region62: #{tpu_custom_call.1} parent=1 // pred_check
      _
    $region63: #{tpu_custom_call.1} parent=1 // pred_check_branch
      %1045 = sbr.rel (0) target = $region65
    $region64: #{tpu_custom_call.1} parent=1 // pred_region
      _
    $region65: #{tpu_custom_call.1} parent=1 // pred_fallthru
      _
    // Predicated region
    $region66: #{tpu_custom_call.1} parent=1 // pred_check
      _
    $region67: #{tpu_custom_call.1} parent=1 // pred_check_branch
      %1047 = sbr.rel (0) target = $region69
    $region68: #{tpu_custom_call.1} parent=1 // pred_region
      %1048 = dma.done [#allocation4], 512
    $region69: #{tpu_custom_call.1} parent=1 // pred_fallthru
      _
    // Predicated region
    $region70: #{tpu_custom_call.1} parent=1 // pred_check
      _
    $region71: #{tpu_custom_call.1} parent=1 // pred_check_branch
      %1050 = sbr.rel (0) target = $region73
    $region72: #{tpu_custom_call.1} parent=1 // pred_region
      _
    $region73: #{tpu_custom_call.1} parent=1 // pred_fallthru
      _
    %1051 = vsyncpa [#allocation3], 1
    %1052 = vsyncpa [#allocation6], 1
    %1053 = vsyncpa [#allocation9], 1
    %1054 = vsyncpa [#allocation4], 1

</llo_original>
